<compile_context>
chip_gen: v6e
topology: v6e:2x2x1
jax: 0.10.0
libtpu: 0.0.40
codegen_flags: <defaults>
</compile_context>

<pallas_src>
import functools

import jax
import jax.numpy as jnp
from jax import lax
from jax.experimental import pallas as pl
from jax.experimental.pallas import tpu as pltpu


def _round_up(x: int, m: int) -> int:
    return ((x + m - 1) // m) * m


def _ceil_div(a: int, b: int) -> int:
    return -(-a // b)


_SQRT_2_OVER_PI = 0.7978845608028654
_GELU_C2 = 0.044715 * _SQRT_2_OVER_PI


def _gelu_tanh(x):
    # F.gelu(x, approximate='tanh'); refactored to save VALU ops:
    #   0.5*x*(1 + tanh(sqrt(2/pi)*(x + 0.044715*x^3)))
    # = x*(0.5 + 0.5*tanh(x*(c1 + c2*x*x)))
    inner = x * (_SQRT_2_OVER_PI + _GELU_C2 * x * x)
    return x * (0.5 + 0.5 * jnp.tanh(inner))


def _pick_hidden_chunk(hidden: int, target: int = 512) -> int:
    """Largest multiple-of-128 divisor of `hidden` <= target (or `hidden` itself)."""
    if hidden <= target:
        return hidden
    for c in range(target, 127, -128):
        if hidden % c == 0:
            return c
    return hidden  # fallback: single chunk


def mlp_kernel(x_ref, wfc_ref, bfc_ref, wproj_ref, bproj_ref, o_ref, acc_ref,
               *, chunk: int, n_chunks: int):
    # x_ref:     (tm, n_embd)      activation row tile, native dtype
    # wfc_ref:   (n_embd, hidden)  whole weight resident in VMEM (bf16)
    # bfc_ref:   (1, hidden)       f32
    # wproj_ref: (hidden, n_embd)  whole weight resident in VMEM (bf16)
    # bproj_ref: (1, n_embd)       f32
    # o_ref:     (tm, n_embd)      output tile (activation dtype)
    # acc_ref:   (tm, n_embd)      f32 scratch accumulator
    x = x_ref[...].astype(wfc_ref.dtype)      # cast to MXU dtype in VMEM
    acc_ref[...] = jnp.zeros_like(acc_ref)

    def body(c, carry):
        start = pl.multiple_of(c * chunk, chunk)
        # Partial first matmul on a hidden chunk: bf16 operands, f32 accumulate.
        h = jnp.dot(x, wfc_ref[:, pl.ds(start, chunk)],
                    preferred_element_type=jnp.float32)
        h = h + bfc_ref[:, pl.ds(start, chunk)]   # bias add in f32
        g = _gelu_tanh(h)                         # tanh-GELU in f32 (VPU/EUP)
        # Partial second matmul, accumulated into the f32 VMEM scratch.
        acc_ref[...] += jnp.dot(g.astype(wproj_ref.dtype),
                                wproj_ref[pl.ds(start, chunk), :],
                                preferred_element_type=jnp.float32)
        return carry

    lax.fori_loop(0, n_chunks, body, 0, unroll=True)
    o_ref[...] = (acc_ref[...] + bproj_ref[...]).astype(o_ref.dtype)


def _vmem_limit_bytes(tm, n_embd, hidden, chunk,
                      w_itemsize, x_itemsize, out_itemsize):
    weights = (2 * n_embd * hidden) * w_itemsize + (hidden + n_embd) * 4
    io = 2 * tm * n_embd * (x_itemsize + out_itemsize)   # double-buffered I/O tiles
    scratch = tm * n_embd * 4 + 2 * tm * chunk * 4        # acc + live h/g chunk
    total = weights + io + scratch + (8 << 20)            # Mosaic internal headroom
    return int(min(max(total, 32 << 20), 100 << 20))


def prepare_mlp_params(w_fc, b_fc, w_proj, b_proj, *, compute_dtype=jnp.bfloat16):
    """One-time parameter prep — call OUTSIDE jit so no per-call HBM cast pass.

    Inputs are (in, out)-layout weights: w_fc (n_embd, 4n), w_proj (4n, n_embd).
    """
    hidden = w_fc.shape[1]
    n_embd = w_proj.shape[1]
    return (w_fc.astype(compute_dtype),
            b_fc.reshape(1, hidden).astype(jnp.float32),
            w_proj.astype(compute_dtype),
            b_proj.reshape(1, n_embd).astype(jnp.float32))


@functools.partial(jax.jit, static_argnames=("tm",))
def mlp_pallas(x, w_fc, b_fc, w_proj, b_proj, *, tm=256):
    """x: (B, T, n_embd) in native dtype. Params from prepare_mlp_params()."""
    B, T, n_embd = x.shape
    hidden = w_fc.shape[1]
    M = B * T

    # Row tile: large MXU-filling tiles, but always >= 2 grid steps when M >= 16
    # so both v7x TensorCores get work ("parallel" M axis). Floor of 8 keeps the
    # f32 block at the native (8, 128) sublane tile.
    tm_eff = max(8, min(tm, _round_up(_ceil_div(M, 2), 8)))
    grid_m = _ceil_div(M, tm_eff)   # ragged last block handled by Pallas (no pad copy)

    chunk = _pick_hidden_chunk(hidden)
    n_chunks = hidden // chunk

    x2d = x.reshape(M, n_embd)

    # Weights / biases: whole-array, single-buffered, resident in VMEM.
    resident_vmem = pl.BlockSpec(memory_space=pltpu.MemorySpace.VMEM)

    out2d = pl.pallas_call(
        functools.partial(mlp_kernel, chunk=chunk, n_chunks=n_chunks),
        out_shape=jax.ShapeDtypeStruct((M, n_embd), x.dtype),
        grid=(grid_m,),
        in_specs=[
            pl.BlockSpec((tm_eff, n_embd), lambda i: (i, 0)),  # x row tile
            resident_vmem,                                     # w_fc
            resident_vmem,                                     # b_fc
            resident_vmem,                                     # w_proj
            resident_vmem,                                     # b_proj
        ],
        out_specs=pl.BlockSpec((tm_eff, n_embd), lambda i: (i, 0)),
        scratch_shapes=[pltpu.VMEM((tm_eff, n_embd), jnp.float32)],
        compiler_params=pltpu.CompilerParams(
            dimension_semantics=("parallel",),
            vmem_limit_bytes=_vmem_limit_bytes(
                tm_eff, n_embd, hidden, chunk,
                jnp.dtype(w_fc.dtype).itemsize,
                jnp.dtype(x.dtype).itemsize,
                jnp.dtype(x.dtype).itemsize),
        ),
    )(x2d, w_fc, b_fc, w_proj, b_proj)

    return out2d.reshape(B, T, n_embd)


def mlp_ref(x, w_fc, b_fc, w_proj, b_proj):
    h = jnp.einsum("btd,dh->bth", x, w_fc) + b_fc
    g = _gelu_tanh(h)
    return jnp.einsum("bth,hd->btd", g, w_proj) + b_proj


if __name__ == "__main__":
    n_embd = 32
    batch, seq = 2, 8
    hidden = 4 * n_embd

    key = jax.random.PRNGKey(0)
    kx, k1, k2, k3, k4 = jax.random.split(key, 5)

    x = jax.random.normal(kx, (batch, seq, n_embd), dtype=jnp.float32)

    # Deterministic parameter init mirroring nn.Linear bounds, stored
    # pre-transposed as (in, out) for the kernel.
    bound_fc = 1.0 / (n_embd ** 0.5)
    bound_pr = 1.0 / (hidden ** 0.5)
    w_fc = jax.random.uniform(k1, (n_embd, hidden), jnp.float32,
                              -bound_fc, bound_fc)
    b_fc = jax.random.uniform(k2, (hidden,), jnp.float32, -bound_fc, bound_fc)
    w_proj = jax.random.uniform(k3, (hidden, n_embd), jnp.float32,
                                -bound_pr, bound_pr)
    b_proj = jax.random.uniform(k4, (n_embd,), jnp.float32, -bound_pr, bound_pr)

    # One-time prep OUTSIDE jit: bf16 weights, f32 (1, n) biases.
    params = prepare_mlp_params(w_fc, b_fc, w_proj, b_proj)

    out = mlp_pallas(x, *params)
    out = jax.block_until_ready(out)

    ref = mlp_ref(x, w_fc, b_fc, w_proj, b_proj)
    assert out.shape == (batch, seq, n_embd)
    # bf16 MXU operands with f32 accumulation: loosen tolerance vs f32 reference.
    assert jnp.allclose(out, ref, atol=5e-2, rtol=5e-2), "mismatch vs reference"

    print("KERNEL_OK")
</pallas_src>

<mosaic_0001>
module attributes {stable_mosaic.version = 11 : i64} {
  func.func @mlp_kernel(%arg0: i32, %arg1: memref<8x32xf32, #tpu.memory_space<vmem>>, %arg2: memref<32x128xbf16, #tpu.memory_space<vmem>>, %arg3: memref<1x128xf32, #tpu.memory_space<vmem>>, %arg4: memref<128x32xbf16, #tpu.memory_space<vmem>>, %arg5: memref<1x32xf32, #tpu.memory_space<vmem>>, %arg6: memref<8x32xf32, #tpu.memory_space<vmem>>, %arg7: memref<8x32xf32, #tpu.memory_space<vmem>>) attributes {dimension_semantics = [#tpu.dimension_semantics<parallel>], iteration_bounds = array<i64: 2>, scalar_prefetch = 0 : i64, scratch_operands = 1 : i64, tpu.core_type = #tpu.core_type<tc>, window_params = [{transform_indices = @transform_0, window_bounds = array<i64: 8, 32>}, {pipeline_mode = #tpu.pipeline_mode<synchronous>, transform_indices = @transform_1, window_bounds = array<i64: 32, 128>}, {pipeline_mode = #tpu.pipeline_mode<synchronous>, transform_indices = @transform_2, window_bounds = array<i64: 1, 128>}, {pipeline_mode = #tpu.pipeline_mode<synchronous>, transform_indices = @transform_3, window_bounds = array<i64: 128, 32>}, {pipeline_mode = #tpu.pipeline_mode<synchronous>, transform_indices = @transform_4, window_bounds = array<i64: 1, 32>}, {transform_indices = @transform_5, window_bounds = array<i64: 8, 32>}]} {
    %c0 = arith.constant 0 : index
    %c0_0 = arith.constant 0 : index
    %0 = vector.load %arg1[%c0, %c0_0] : memref<8x32xf32, #tpu.memory_space<vmem>>, vector<8x32xf32>
    %1 = arith.truncf %0 : vector<8x32xf32> to vector<8x32xbf16>
    %cst = arith.constant 0.000000e+00 : f32
    %2 = vector.broadcast %cst : f32 to vector<8x32xf32>
    %c0_1 = arith.constant 0 : index
    %c0_2 = arith.constant 0 : index
    %3 = vector.load %arg7[%c0_1, %c0_2] : memref<8x32xf32, #tpu.memory_space<vmem>>, vector<8x32xf32>
    tpu.vector_store %arg7[%c0_1, %c0_2], %2 {strides = array<i32>} : memref<8x32xf32, #tpu.memory_space<vmem>>, vector<8x32xf32>,
    %c0_i32 = arith.constant 0 : i32
    %c128_i32 = arith.constant 128 : i32
    %4 = arith.muli %c0_i32, %c128_i32 : i32
    %5 = tpu.assume_multiple %4, 128 : i32
    %c0_3 = arith.constant 0 : index
    %6 = arith.index_cast %5 : i32 to index
    %7 = vector.load %arg2[%c0_3, %6] : memref<32x128xbf16, #tpu.memory_space<vmem>>, vector<32x128xbf16>
    %cst_4 = arith.constant dense<0.000000e+00> : vector<8x128xf32>
    %8 = tpu.matmul %1, %7, %cst_4 {dimension_numbers = #tpu.dot_dimension_numbers<[1], [0], [0], [1], [0, 0, 1, 1], [], []>} : vector<8x32xbf16>, vector<32x128xbf16>, vector<8x128xf32> -> vector<8x128xf32>
    %c0_5 = arith.constant 0 : index
    %9 = arith.index_cast %5 : i32 to index
    %10 = vector.load %arg3[%c0_5, %9] : memref<1x128xf32, #tpu.memory_space<vmem>>, vector<1x128xf32>
    %11 = vector.broadcast %10 : vector<1x128xf32> to vector<8x128xf32>
    %12 = arith.addf %8, %11 : vector<8x128xf32>
    %cst_6 = arith.constant 0.0356774069 : f32
    %13 = vector.broadcast %cst_6 : f32 to vector<8x128xf32>
    %14 = arith.mulf %13, %12 : vector<8x128xf32>
    %15 = arith.mulf %14, %12 : vector<8x128xf32>
    %cst_7 = arith.constant 0.797884583 : f32
    %16 = vector.broadcast %cst_7 : f32 to vector<8x128xf32>
    %17 = arith.addf %16, %15 : vector<8x128xf32>
    %18 = arith.mulf %12, %17 : vector<8x128xf32>
    %19 = math.tanh %18 : vector<8x128xf32>
    %cst_8 = arith.constant 5.000000e-01 : f32
    %20 = vector.broadcast %cst_8 : f32 to vector<8x128xf32>
    %21 = arith.mulf %20, %19 : vector<8x128xf32>
    %cst_9 = arith.constant 5.000000e-01 : f32
    %22 = vector.broadcast %cst_9 : f32 to vector<8x128xf32>
    %23 = arith.addf %22, %21 : vector<8x128xf32>
    %24 = arith.mulf %12, %23 : vector<8x128xf32>
    %c0_10 = arith.constant 0 : index
    %c0_11 = arith.constant 0 : index
    %25 = vector.load %arg7[%c0_10, %c0_11] : memref<8x32xf32, #tpu.memory_space<vmem>>, vector<8x32xf32>
    %26 = arith.truncf %24 : vector<8x128xf32> to vector<8x128xbf16>
    %27 = arith.index_cast %5 : i32 to index
    %c0_12 = arith.constant 0 : index
    %28 = vector.load %arg4[%27, %c0_12] : memref<128x32xbf16, #tpu.memory_space<vmem>>, vector<128x32xbf16>
    %cst_13 = arith.constant dense<0.000000e+00> : vector<8x32xf32>
    %29 = tpu.matmul %26, %28, %cst_13 {dimension_numbers = #tpu.dot_dimension_numbers<[1], [0], [0], [1], [0, 0, 1, 1], [], []>} : vector<8x128xbf16>, vector<128x32xbf16>, vector<8x32xf32> -> vector<8x32xf32>
    %30 = arith.addf %25, %29 : vector<8x32xf32>
    %c0_14 = arith.constant 0 : index
    %c0_15 = arith.constant 0 : index
    %31 = vector.load %arg7[%c0_14, %c0_15] : memref<8x32xf32, #tpu.memory_space<vmem>>, vector<8x32xf32>
    tpu.vector_store %arg7[%c0_14, %c0_15], %30 {strides = array<i32>} : memref<8x32xf32, #tpu.memory_space<vmem>>, vector<8x32xf32>,
    %c1_i32 = arith.constant 1 : i32
    %c0_16 = arith.constant 0 : index
    %c0_17 = arith.constant 0 : index
    %32 = vector.load %arg7[%c0_16, %c0_17] : memref<8x32xf32, #tpu.memory_space<vmem>>, vector<8x32xf32>
    %c0_18 = arith.constant 0 : index
    %c0_19 = arith.constant 0 : index
    %33 = vector.load %arg5[%c0_18, %c0_19] : memref<1x32xf32, #tpu.memory_space<vmem>>, vector<1x32xf32>
    %34 = vector.broadcast %33 : vector<1x32xf32> to vector<8x32xf32>
    %35 = arith.addf %32, %34 : vector<8x32xf32>
    %c0_20 = arith.constant 0 : index
    %c0_21 = arith.constant 0 : index
    %36 = vector.load %arg6[%c0_20, %c0_21] : memref<8x32xf32, #tpu.memory_space<vmem>>, vector<8x32xf32>
    tpu.vector_store %arg6[%c0_20, %c0_21], %35 {strides = array<i32>} : memref<8x32xf32, #tpu.memory_space<vmem>>, vector<8x32xf32>,
    return
  }
  func.func @transform_0(%arg0: i32) -> (i32, i32) {
    %c0_i32 = arith.constant 0 : i32
    %c0_i32_0 = arith.constant 0 : i32
    return %arg0, %c0_i32 : i32, i32
  }
  func.func @transform_1(%arg0: i32) -> (i32, i32) {
    %c0_i32 = arith.constant 0 : i32
    %c0_i32_0 = arith.constant 0 : i32
    %c0_i32_1 = arith.constant 0 : i32
    return %c0_i32, %c0_i32_0 : i32, i32
  }
  func.func @transform_2(%arg0: i32) -> (i32, i32) {
    %c0_i32 = arith.constant 0 : i32
    %c0_i32_0 = arith.constant 0 : i32
    %c0_i32_1 = arith.constant 0 : i32
    return %c0_i32, %c0_i32_0 : i32, i32
  }
  func.func @transform_3(%arg0: i32) -> (i32, i32) {
    %c0_i32 = arith.constant 0 : i32
    %c0_i32_0 = arith.constant 0 : i32
    %c0_i32_1 = arith.constant 0 : i32
    return %c0_i32, %c0_i32_0 : i32, i32
  }
  func.func @transform_4(%arg0: i32) -> (i32, i32) {
    %c0_i32 = arith.constant 0 : i32
    %c0_i32_0 = arith.constant 0 : i32
    %c0_i32_1 = arith.constant 0 : i32
    return %c0_i32, %c0_i32_0 : i32, i32
  }
  func.func @transform_5(%arg0: i32) -> (i32, i32) {
    %c0_i32 = arith.constant 0 : i32
    %c0_i32_0 = arith.constant 0 : i32
    return %arg0, %c0_i32 : i32, i32
  }
}

</mosaic_0001>

<llo_original>
// kernel: mlp_pallas.1
$region0: #{mlp_pallas.1}
  #allocation0 [shape = 'u32[]', space=smem, size = 0x4, offset = 0x4, fixed_abs, tag = 'smem constant byte address 0x4 - core index']
  #allocation1 [shape = 'u32[144,128]{1,0:T(1,128)}', space=vmem, size = 0x12000, scoped, tag = 'internal scratch']
  #allocation2 [shape = 'f32[8,32]{1,0:T(8,128)}', space=vmem, size = 0x1000, scoped, tag = 'scratch operand']
  %s0 = inlined_call_operand.vmem [shape: f32[16,32], index: 0, kind: input, shape index: {}]
  %s1 = inlined_call_operand.vmem [shape: bf16[32,128], index: 1, kind: input, shape index: {}]
  %s2 = inlined_call_operand.vmem [shape: f32[1,128], index: 2, kind: input, shape index: {}]
  %s3 = inlined_call_operand.vmem [shape: bf16[128,32], index: 3, kind: input, shape index: {}]
  %s4 = inlined_call_operand.vmem [shape: f32[1,32], index: 4, kind: input, shape index: {}]
  %s5 = inlined_call_operand.hbm [shape: f32[16,32], index: 5, kind: output, shape index: {}]
  %s6 = sld [smem:[#allocation0]]
  $region53: #{mlp_pallas.1} parent=0
    _
  %s8 = ssub.s32 1, %s6
  %s9 = scalar_select 0, %s8, %s6
  $region1: #{mlp_pallas.1} parent=0
    #allocation3 [shape = 'u8[8192]{0}', space=vmem, size = 0x2000, scoped, tag = 'output window, operand 0']
    #allocation4 [shape = 's32[2]{0}', space=sflag, size = 0x8, scoped, tag = 'scoped memory for mlp_pallas.1']
    %10 = vsyncpa [#allocation4], 0
    %s11 = scalar_lea.sflag [#allocation4], 1
    %12 = vsyncpa %s11, 0
    loop: start=0, step=1, limit=4
    $region2: #{mlp_pallas.1} parent=1 // loop_pre_header
      _
    $region3: #{mlp_pallas.1} parent=1 // loop_header
      %s14 = sphi 0, %s18
      %p15 = scmp.ge.s32.totalorder %s14, 4
      %s24 = sphi 0, %s26
      %s27 = sphi 0, %s24
      %s28 = sphi 0, %s27
      %s44 = sphi 0, %s28
      %s48 = sphi 0, %s48
      %s50 = sphi 0, %s48
      %s51 = sphi 0, %s50
      %s65 = sphi 0, %s51
      %s69 = sphi 0, %s69
      %s71 = sphi 0, %s69
      %s72 = sphi 0, %s71
      %s86 = sphi 0, %s72
      %s90 = sphi 0, %s90
      %s92 = sphi 0, %s90
      %s93 = sphi 0, %s92
      %s107 = sphi 0, %s93
      %s111 = sphi 0, %s111
      %s113 = sphi 0, %s111
      %s114 = sphi 0, %s113
      %s128 = sphi 0, %s114
      %s134 = sphi 0, %s136
      %s137 = sphi 0, %s134
      %s138 = sphi 0, %s137
      %s154 = sphi 0, %s138
    $region4: #{mlp_pallas.1} parent=1 // loop_header_branch
      %17 = sbr.rel (%p15) target = $region8
    $region5: #{mlp_pallas.1} parent=1 // loop_body
      %s19 = ssub.s32 %s14, 1
      %s20 = ssub.s32 %s14, 2
      %s21 = sadd.s32 %s14, 1
      %s22 = ssub.s32 %s14, %s21
      %p23 = scmp.eq.s32.totalorder %s22, 0
      %s25 = sadd.s32 %s24, 1
      %s26 = scalar_select %p23, %s24, %s25
      %p29 = pneg %p23
      %p30 = scmp.eq.s32.totalorder %s14, 1
      %p31 = por %p29, %p30
      %p32 = scmp.ne.s32.totalorder %s24, %s27
      %p33 = scmp.eq.s32.totalorder %s14, 0
      %p34 = por %p32, %p33
      %p35 = scmp.ne.s32.totalorder %s24, %s27
      %p36 = scmp.eq.s32.totalorder %s19, 1
      %p37 = por %p35, %p36
      %p38 = scmp.ne.s32.totalorder %s27, %s28
      %p39 = scmp.eq.s32.totalorder %s19, 0
      %p40 = por %p38, %p39
      %p41 = scmp.ne.s32.totalorder %s27, %s28
      %p42 = scmp.eq.s32.totalorder %s20, 1
      %p43 = por %p41, %p42
      %p45 = scmp.ne.s32.totalorder %s28, %s44
      %p46 = scmp.eq.s32.totalorder %s20, 0
      %p47 = por %p45, %p46
      %s49 = sadd.s32 %s48, 1
      %p52 = scmp.eq.s32.totalorder %s14, 1
      %p53 = scmp.ne.s32.totalorder %s48, %s50
      %p54 = scmp.eq.s32.totalorder %s14, 0
      %p55 = por %p53, %p54
      %p56 = scmp.ne.s32.totalorder %s48, %s50
      %p57 = scmp.eq.s32.totalorder %s19, 1
      %p58 = por %p56, %p57
      %p59 = scmp.ne.s32.totalorder %s50, %s51
      %p60 = scmp.eq.s32.totalorder %s19, 0
      %p61 = por %p59, %p60
      %p62 = scmp.ne.s32.totalorder %s50, %s51
      %p63 = scmp.eq.s32.totalorder %s20, 1
      %p64 = por %p62, %p63
      %p66 = scmp.ne.s32.totalorder %s51, %s65
      %p67 = scmp.eq.s32.totalorder %s20, 0
      %p68 = por %p66, %p67
      %s70 = sadd.s32 %s69, 1
      %p73 = scmp.eq.s32.totalorder %s14, 1
      %p74 = scmp.ne.s32.totalorder %s69, %s71
      %p75 = scmp.eq.s32.totalorder %s14, 0
      %p76 = por %p74, %p75
      %p77 = scmp.ne.s32.totalorder %s69, %s71
      %p78 = scmp.eq.s32.totalorder %s19, 1
      %p79 = por %p77, %p78
      %p80 = scmp.ne.s32.totalorder %s71, %s72
      %p81 = scmp.eq.s32.totalorder %s19, 0
      %p82 = por %p80, %p81
      %p83 = scmp.ne.s32.totalorder %s71, %s72
      %p84 = scmp.eq.s32.totalorder %s20, 1
      %p85 = por %p83, %p84
      %p87 = scmp.ne.s32.totalorder %s72, %s86
      %p88 = scmp.eq.s32.totalorder %s20, 0
      %p89 = por %p87, %p88
      %s91 = sadd.s32 %s90, 1
      %p94 = scmp.eq.s32.totalorder %s14, 1
      %p95 = scmp.ne.s32.totalorder %s90, %s92
      %p96 = scmp.eq.s32.totalorder %s14, 0
      %p97 = por %p95, %p96
      %p98 = scmp.ne.s32.totalorder %s90, %s92
      %p99 = scmp.eq.s32.totalorder %s19, 1
      %p100 = por %p98, %p99
      %p101 = scmp.ne.s32.totalorder %s92, %s93
      %p102 = scmp.eq.s32.totalorder %s19, 0
      %p103 = por %p101, %p102
      %p104 = scmp.ne.s32.totalorder %s92, %s93
      %p105 = scmp.eq.s32.totalorder %s20, 1
      %p106 = por %p104, %p105
      %p108 = scmp.ne.s32.totalorder %s93, %s107
      %p109 = scmp.eq.s32.totalorder %s20, 0
      %p110 = por %p108, %p109
      %s112 = sadd.s32 %s111, 1
      %p115 = scmp.eq.s32.totalorder %s14, 1
      %p116 = scmp.ne.s32.totalorder %s111, %s113
      %p117 = scmp.eq.s32.totalorder %s14, 0
      %p118 = por %p116, %p117
      %p119 = scmp.ne.s32.totalorder %s111, %s113
      %p120 = scmp.eq.s32.totalorder %s19, 1
      %p121 = por %p119, %p120
      %p122 = scmp.ne.s32.totalorder %s113, %s114
      %p123 = scmp.eq.s32.totalorder %s19, 0
      %p124 = por %p122, %p123
      %p125 = scmp.ne.s32.totalorder %s113, %s114
      %p126 = scmp.eq.s32.totalorder %s20, 1
      %p127 = por %p125, %p126
      %p129 = scmp.ne.s32.totalorder %s114, %s128
      %p130 = scmp.eq.s32.totalorder %s20, 0
      %p131 = por %p129, %p130
      %s132 = ssub.s32 %s14, %s21
      %p133 = scmp.eq.s32.totalorder %s132, 0
      %s135 = sadd.s32 %s134, 1
      %s136 = scalar_select %p133, %s134, %s135
      %p139 = pneg %p133
      %p140 = scmp.eq.s32.totalorder %s14, 1
      %p141 = por %p139, %p140
      %p142 = scmp.ne.s32.totalorder %s134, %s137
      %p143 = scmp.eq.s32.totalorder %s14, 0
      %p144 = por %p142, %p143
      %p145 = scmp.ne.s32.totalorder %s134, %s137
      %p146 = scmp.eq.s32.totalorder %s19, 1
      %p147 = por %p145, %p146
      %p148 = scmp.ne.s32.totalorder %s137, %s138
      %p149 = scmp.eq.s32.totalorder %s19, 0
      %p150 = por %p148, %p149
      %p151 = scmp.ne.s32.totalorder %s137, %s138
      %p152 = scmp.eq.s32.totalorder %s20, 1
      %p153 = por %p151, %p152
      %p155 = scmp.ne.s32.totalorder %s138, %s154
      %p156 = scmp.eq.s32.totalorder %s20, 0
      %p157 = por %p155, %p156
      %p158 = scmp.le.s32.totalorder 1, %s14
      %p159 = scmp.lt.s32.totalorder %s14, 3
      %p160 = pnand %p158, %p159
      %p161 = pneg %p160
      // Predicated region
      $region9: #{mlp_pallas.1} parent=5 // pred_check
        _
      $region10: #{mlp_pallas.1} parent=5 // pred_check_branch
        %163 = sbr.rel (%p160) target = $region12
      $region11: #{mlp_pallas.1} parent=5 // pred_region
        %s164 = ssub.s32 %s14, 1
        // Predicated region
        $region13: #{mlp_pallas.1} parent=11 // pred_check
          %p165 = pneg %p61
        $region14: #{mlp_pallas.1} parent=11 // pred_check_branch
          %167 = sbr.rel (%p165) target = $region16
        $region15: #{mlp_pallas.1} parent=11 // pred_region
          _
        $region16: #{mlp_pallas.1} parent=11 // pred_fallthru
          _
        // Predicated region
        $region17: #{mlp_pallas.1} parent=11 // pred_check
          %p168 = pneg %p82
        $region18: #{mlp_pallas.1} parent=11 // pred_check_branch
          %170 = sbr.rel (%p168) target = $region20
        $region19: #{mlp_pallas.1} parent=11 // pred_region
          _
        $region20: #{mlp_pallas.1} parent=11 // pred_fallthru
          _
        // Predicated region
        $region21: #{mlp_pallas.1} parent=11 // pred_check
          %p171 = pneg %p103
        $region22: #{mlp_pallas.1} parent=11 // pred_check_branch
          %173 = sbr.rel (%p171) target = $region24
        $region23: #{mlp_pallas.1} parent=11 // pred_region
          _
        $region24: #{mlp_pallas.1} parent=11 // pred_fallthru
          _
        // Predicated region
        $region25: #{mlp_pallas.1} parent=11 // pred_check
          %p174 = pneg %p124
        $region26: #{mlp_pallas.1} parent=11 // pred_check_branch
          %176 = sbr.rel (%p174) target = $region28
        $region27: #{mlp_pallas.1} parent=11 // pred_region
          _
        $region28: #{mlp_pallas.1} parent=11 // pred_fallthru
          _
      $region12: #{mlp_pallas.1} parent=5 // pred_fallthru
        _
      %p177 = scmp.lt.s32.totalorder %s14, 2
      // Predicated region
      $region29: #{mlp_pallas.1} parent=5 // pred_check
        %p178 = pneg %p177
      $region30: #{mlp_pallas.1} parent=5 // pred_check_branch
        %180 = sbr.rel (%p178) target = $region32
      $region31: #{mlp_pallas.1} parent=5 // pred_region
        // Predicated region
        $region33: #{mlp_pallas.1} parent=31 // pred_check
          %p181 = pneg %p34
        $region34: #{mlp_pallas.1} parent=31 // pred_check_branch
          %183 = sbr.rel (%p181) target = $region36
        $region35: #{mlp_pallas.1} parent=31 // pred_region
          %p184 = scmp.lt.s32.totalorder %s14, 1
          %s185 = scalar_select %p184, %s14, 1
          %s186 = smul.addr %s185, 8
          %s187 = scalar_lea.vmem %s0, %s186
        $region36: #{mlp_pallas.1} parent=31 // pred_fallthru
          _
      $region32: #{mlp_pallas.1} parent=5 // pred_fallthru
        _
      %p188 = scmp.le.s32.totalorder 1, %s14
      %p189 = scmp.lt.s32.totalorder %s14, 3
      %p190 = pnand %p188, %p189
      %p191 = pneg %p190
      // Predicated region
      $region37: #{mlp_pallas.1} parent=5 // pred_check
        _
      $region38: #{mlp_pallas.1} parent=5 // pred_check_branch
        %193 = sbr.rel (%p190) target = $region40
      $region39: #{mlp_pallas.1} parent=5 // pred_region
        %s194 = ssub.s32 %s14, 1
        %p195 = scmp.lt.s32.totalorder %s19, 1
        %s196 = scalar_select %p195, %s19, 1
        %s197 = smul.addr %s196, 8
        %s198 = scalar_lea.vmem %s0, %s197
        %p199 = pneg %p40
        %p200 = pneg %p37
        %p201 = pneg %p61
        %p202 = pneg %p58
        %p203 = pneg %p82
        %p204 = pneg %p79
        %p205 = pneg %p103
        %p206 = pneg %p100
        %p207 = pneg %p124
        %p208 = pneg %p121
        %p209 = pneg %p150
        %p210 = pneg %p147
        %s211 = sand.u32 %s137, 1
        %s212 = scalar_lea.sflag [#allocation4], %s211
        %s213 = sand.u32 %s137, 1
        %s214 = smul.addr %s213, 8
        %s215 = scalar_lea.vmem [#allocation3], %s214
        %p216 = scmp.lt.s32.totalorder %s19, 1
        %s217 = scalar_select %p216, %s19, 1
        %s218 = smul.addr %s217, 8
        %s219 = scalar_lea.vmem %s0, %s218
        %v221 = vld [vmem:[%s219] sm:$0xff]
        %v222 = vpack.c.bf16 %v221, %v221
        %vm223 = vcmask 261120
        %224 = vst.msk [vmem:[#allocation2] sm:$0xff] %vm223, 0.0
        %v225 = vld [vmem:[%s1] sm:$0xf]
        %v226 = vld [vmem:[%s1 + $0x4] sm:$0xf]
        %v227 = vld [vmem:[%s1 + $0x8] sm:$0xf]
        %v228 = vld [vmem:[%s1 + $0xc] sm:$0xf]
        %v229 = vld [vmem:[%s2] sm:$0x1]
        %v231 = vlaneseq
        %v232 = vshrl.u32 %v231, 7
        %v233 = vsub.s32 0, %v232
        %v234 = vrot.slane %v229, %v233
        %v240 = vunpack.c.l.b16 %v225
        %v241 = vunpack.c.l.b16 %v226
        %v242 = vunpack.c.l.b16 %v227
        %v243 = vunpack.c.l.b16 %v228
        %v244 = vpack.c.b16 %v241, %v240
        %v245 = vpack.c.b16 %v243, %v242
        %v249 = vsel %vm223, %v222, 0
        %251 = vmatprep.subr.bf16.mxu0 0
        %252 = vmatpush1.bf16.msra.mxu0 0
        %253 = vmatprep.subr.bf16.mxu0 0
        %254 = vmatpush1.bf16.msra.mxu0 0
        %255 = vmatprep.subr.bf16.mxu0 0
        %256 = vmatpush1.bf16.msra.mxu0 0
        %257 = vmatprep.subr.bf16.mxu0 0
        %258 = vmatpush1.bf16.msra.mxu0 0
        %259 = vmatprep.subr.bf16.mxu0 0
        %260 = vmatpush1.bf16.msra.mxu0 0
        %261 = vmatprep.subr.bf16.mxu0 0
        %262 = vmatpush1.bf16.msra.mxu0 0
        %263 = vmatprep.subr.bf16.mxu0 0
        %264 = vmatpush1.bf16.msra.mxu0 %v245
        %265 = vmatprep.subr.bf16.mxu0 0
        %266 = vmatpush1.bf16.msra.mxu0 %v244
        %267 = vmatprep.subr.bf16.mxu0 0
        %268 = vmatpush2.bf16.msra.mxu0 0
        %269 = vmatprep.subr.bf16.mxu0 0
        %270 = vmatpush2.bf16.msra.mxu0 0
        %271 = vmatprep.subr.bf16.mxu0 0
        %272 = vmatpush2.bf16.msra.mxu0 0
        %273 = vmatprep.subr.bf16.mxu0 0
        %274 = vmatpush2.bf16.msra.mxu0 0
        %275 = vmatprep.subr.bf16.mxu0 0
        %276 = vmatpush2.bf16.msra.mxu0 0
        %277 = vmatprep.subr.bf16.mxu0 0
        %278 = vmatpush2.bf16.msra.mxu0 0
        %279 = vmatprep.subr.bf16.mxu0 0
        %280 = vmatpush2.bf16.msra.mxu0 0
        %281 = vmatprep.subr.bf16.mxu0 0
        %282 = vmatpush2.bf16.msra.mxu0 0
        %283 = vmatprep.mubr.bf16.mxu0 0
        %284 = vmatmul.mubr.bf16.gmra.mxu0 %v249
        %v285 = vpop.f32.mrf.mxu0
        %v286 = vadd.f32 %v234, %v285
        %v287 = vpop.f32.mrf.mxu0
        %v288 = vpop.f32.mrf.mxu0
        %v289 = vpop.f32.mrf.mxu0
        %290 = vdwg.mxu0
        %v291 = vmul.f32 %v286, 0.035677407
        %v292 = vmul.f32 %v291, %v286
        %v293 = vadd.f32 %v292, 0.7978846
        %v294 = vmul.f32 %v286, %v293
        %v295 = vtanh.pop %v294
        %v296 = vmul.f32 %v295, 0.5
        %v297 = vadd.f32 %v296, 0.5
        %v298 = vmul.f32 %v286, %v297
        %v299 = vld [vmem:[#allocation2] sm:$0xff]
        %v300 = vpack.c.bf16 %v298, %v298
        %v301 = vld [vmem:[%s3] sm:$0xf]
        %v302 = vld [vmem:[%s3 + $0x4] sm:$0xf]
        %v303 = vld [vmem:[%s3 + $0x8] sm:$0xf]
        %v304 = vld [vmem:[%s3 + $0xc] sm:$0xf]
        %v305 = vld [vmem:[%s3 + $0x10] sm:$0xf]
        %v306 = vld [vmem:[%s3 + $0x14] sm:$0xf]
        %v307 = vld [vmem:[%s3 + $0x18] sm:$0xf]
        %v308 = vld [vmem:[%s3 + $0x1c] sm:$0xf]
        %v309 = vld [vmem:[%s3 + $0x20] sm:$0xf]
        %v310 = vld [vmem:[%s3 + $0x24] sm:$0xf]
        %v311 = vld [vmem:[%s3 + $0x28] sm:$0xf]
        %v312 = vld [vmem:[%s3 + $0x2c] sm:$0xf]
        %v313 = vld [vmem:[%s3 + $0x30] sm:$0xf]
        %v314 = vld [vmem:[%s3 + $0x34] sm:$0xf]
        %v315 = vld [vmem:[%s3 + $0x38] sm:$0xf]
        %v316 = vld [vmem:[%s3 + $0x3c] sm:$0xf]
        %v333 = vunpack.c.l.b16 %v301
        %v334 = vunpack.c.l.b16 %v302
        %v335 = vunpack.c.l.b16 %v303
        %v336 = vunpack.c.l.b16 %v304
        %v337 = vunpack.c.l.b16 %v305
        %v338 = vunpack.c.l.b16 %v306
        %v339 = vunpack.c.l.b16 %v307
        %v340 = vunpack.c.l.b16 %v308
        %v341 = vunpack.c.l.b16 %v309
        %v342 = vunpack.c.l.b16 %v310
        %v343 = vunpack.c.l.b16 %v311
        %v344 = vunpack.c.l.b16 %v312
        %v345 = vunpack.c.l.b16 %v313
        %v346 = vunpack.c.l.b16 %v314
        %v347 = vunpack.c.l.b16 %v315
        %v348 = vunpack.c.l.b16 %v316
        %v349 = vpack.c.b16 %v334, %v333
        %v350 = vpack.c.b16 %v336, %v335
        %v351 = vpack.c.b16 %v338, %v337
        %v352 = vpack.c.b16 %v340, %v339
        %v353 = vpack.c.b16 %v342, %v341
        %v354 = vpack.c.b16 %v344, %v343
        %v355 = vpack.c.b16 %v346, %v345
        %v356 = vpack.c.b16 %v348, %v347
        %365 = vmatprep.subr.bf16.mxu0 0
        %366 = vmatpush1.bf16.msra.mxu0 %v356
        %367 = vmatprep.subr.bf16.mxu0 0
        %368 = vmatpush1.bf16.msra.mxu0 %v355
        %369 = vmatprep.subr.bf16.mxu0 0
        %370 = vmatpush1.bf16.msra.mxu0 %v354
        %371 = vmatprep.subr.bf16.mxu0 0
        %372 = vmatpush1.bf16.msra.mxu0 %v353
        %373 = vmatprep.subr.bf16.mxu0 0
        %374 = vmatpush1.bf16.msra.mxu0 %v352
        %375 = vmatprep.subr.bf16.mxu0 0
        %376 = vmatpush1.bf16.msra.mxu0 %v351
        %377 = vmatprep.subr.bf16.mxu0 0
        %378 = vmatpush1.bf16.msra.mxu0 %v350
        %379 = vmatprep.subr.bf16.mxu0 0
        %380 = vmatpush1.bf16.msra.mxu0 %v349
        %381 = vmatprep.subr.bf16.mxu0 0
        %382 = vmatpush2.bf16.msra.mxu0 0
        %383 = vmatprep.subr.bf16.mxu0 0
        %384 = vmatpush2.bf16.msra.mxu0 0
        %385 = vmatprep.subr.bf16.mxu0 0
        %386 = vmatpush2.bf16.msra.mxu0 0
        %387 = vmatprep.subr.bf16.mxu0 0
        %388 = vmatpush2.bf16.msra.mxu0 0
        %389 = vmatprep.subr.bf16.mxu0 0
        %390 = vmatpush2.bf16.msra.mxu0 0
        %391 = vmatprep.subr.bf16.mxu0 0
        %392 = vmatpush2.bf16.msra.mxu0 0
        %393 = vmatprep.subr.bf16.mxu0 0
        %394 = vmatpush2.bf16.msra.mxu0 0
        %395 = vmatprep.subr.bf16.mxu0 0
        %396 = vmatpush2.bf16.msra.mxu0 0
        %397 = vmatprep.mubr.bf16.mxu0 0
        %398 = vmatmul.mubr.bf16.gmra.mxu0 %v300
        %v399 = vpop.f32.mrf.mxu0
        %v400 = vadd.f32 0.0, %v399
        %v401 = vpop.f32.mrf.mxu0
        %v402 = vpop.f32.mrf.mxu0
        %v403 = vpop.f32.mrf.mxu0
        %404 = vdwg.mxu0
        %v405 = vadd.f32 %v299, %v400
        %406 = vst.msk [vmem:[#allocation2] sm:$0xff] %vm223, %v405
        %v407 = vld [vmem:[#allocation2] sm:$0xff]
        %v408 = vld [vmem:[%s4] sm:$0x1]
        %v410 = vlaneseq
        %v411 = vshrl.u32 %v410, 7
        %v412 = vsub.s32 0, %v411
        %v413 = vrot.slane %v408, %v412
        %v415 = vadd.f32 %v407, %v413
        %416 = vst.msk [vmem:[%s215] sm:$0xff] %vm223, %v415
        %s417 = sand.u32 %s137, 1
        %s418 = scalar_lea.sflag [#allocation4], %s417
        %s419 = sand.u32 %s137, 1
        %s420 = smul.addr %s419, 8
        %s421 = scalar_lea.vmem [#allocation3], %s420
        // Predicated region
        $region41: #{mlp_pallas.1} parent=39 // pred_check
          %p422 = pneg %p147
        $region42: #{mlp_pallas.1} parent=39 // pred_check_branch
          %424 = sbr.rel (%p422) target = $region44
        $region43: #{mlp_pallas.1} parent=39 // pred_region
          %s426 = ssub.s32 128, 128
          %427 = vsyncadd %s418, %s426
          %s428 = smul.addr %s19, 128
          %s429 = scalar_lea.hbm %s5, %s428
          %s431 = sshll.u32 %s421, 4
          %s432 = int_to_ptr.vmem [resolvable:$true] %s431
          %434 = dma.vmem_to_hbm [thread:$0]  %s432, 128, %s429, %s418
        $region44: #{mlp_pallas.1} parent=39 // pred_fallthru
          _
      $region40: #{mlp_pallas.1} parent=5 // pred_fallthru
        _
      %p435 = scmp.le.s32.totalorder 2, %s14
      // Predicated region
      $region45: #{mlp_pallas.1} parent=5 // pred_check
        %p436 = pneg %p435
      $region46: #{mlp_pallas.1} parent=5 // pred_check_branch
        %438 = sbr.rel (%p436) target = $region48
      $region47: #{mlp_pallas.1} parent=5 // pred_region
        %s439 = ssub.s32 %s14, 2
        // Predicated region
        $region49: #{mlp_pallas.1} parent=47 // pred_check
          %p440 = pneg %p153
        $region50: #{mlp_pallas.1} parent=47 // pred_check_branch
          %442 = sbr.rel (%p440) target = $region52
        $region51: #{mlp_pallas.1} parent=47 // pred_region
          %s443 = sand.u32 %s138, 1
          %s444 = scalar_lea.sflag [#allocation4], %s443
          %s445 = sand.u32 %s138, 1
          %s446 = smul.addr %s445, 8
          %s447 = scalar_lea.vmem [#allocation3], %s446
          %448 = dma.done %s444, 128
        $region52: #{mlp_pallas.1} parent=47 // pred_fallthru
          _
      $region48: #{mlp_pallas.1} parent=5 // pred_fallthru
        _
    $region6: #{mlp_pallas.1} parent=1 // loop_footer
      %s18 = sadd.s32 1, %s14
    $region7: #{mlp_pallas.1} parent=1 // loop_footer_branch
      %13 = sbr.rel target = $region3
    $region8: #{mlp_pallas.1} parent=1 // loop_exit
      _
    %449 = vsyncpa [#allocation4], 1
    %s450 = scalar_lea.sflag [#allocation4], 1
    %451 = vsyncpa %s450, 1

</llo_original>
